<compile_context>
chip_gen: v7x
topology: tpu7x:2x2x1
jax: 0.10.0
libtpu: 0.0.40
codegen_flags: <defaults>
</compile_context>

<pallas_src>
import numpy as np
import jax
import jax.numpy as jnp
from jax.experimental import pallas as pl
from jax.experimental.pallas import tpu as pltpu

TAU = 0.07          # SupConLoss temperature
EPS = 1e-8          # SupConLoss.eps
NORM_EPS = 1e-12    # torch.nn.functional.normalize default eps

BATCH = 16
FEAT_DIM = 32
N_CLASSES = 4


def supcon_kernel(f_ref, lab_ref, out_ref, acc_ref):
    f = f_ref[...]                                   # (N, D) f32, raw (Mosaic pads lanes)
    n = f.shape[0]

    # ---- L2 normalize along the feature axis (rsqrt -> EUP slot) ----
    # F.normalize: f / max(||f||, 1e-12) == f * rsqrt(max(||f||^2, 1e-24))
    sq = jnp.sum(f * f, axis=1, keepdims=True)       # (N, 1)
    fn = f * jax.lax.rsqrt(jnp.maximum(sq, NORM_EPS * NORM_EPS))

    # ---- cosine-similarity matrix on the MXU: bf16 inputs, f32 accumulation ----
    fnb = fn.astype(jnp.bfloat16)
    sim = jax.lax.dot_general(
        fnb, fnb, (((1,), (1,)), ((), ())),
        preferred_element_type=jnp.float32) * (1.0 / TAU)    # (N, N) f32

    # ---- diagonal mask from a 2-D iota (no eye materialized in HBM) ----
    row = jax.lax.broadcasted_iota(jnp.int32, (n, n), 0)
    col = jax.lax.broadcasted_iota(jnp.int32, (n, n), 1)
    off_diag = row != col                            # (N, N) bool
    sim = jnp.where(off_diag, sim, 0.0)

    # ---- log prob: denominator excludes the diagonal (matches reference) ----
    expv = jnp.where(off_diag, jnp.exp(sim), 0.0)
    denom = jnp.sum(expv, axis=1, keepdims=True) + EPS        # (N, 1)
    log_prob = sim - jnp.log(denom)                           # (N, N)

    # ---- positive-pair mask (diagonal INCLUDED, as in the PyTorch code) ----
    # Labels arrive once as a (1, N) row.  Rebuild the (N, 1) column orientation
    # with an exact identity matvec on the idle MXU (avoids a second label DMA
    # and any small-transpose relayout).
    lab_row = lab_ref[...].astype(jnp.float32)                # (1, N)
    eye_f = (row == col).astype(jnp.float32)                  # (N, N)
    lab_col = jax.lax.dot_general(
        eye_f, lab_row, (((1,), (1,)), ((), ())),
        preferred_element_type=jnp.float32)                   # (N, 1), exact
    pos = lab_col == lab_row                                  # (N, N) bool

    num = jnp.sum(jnp.where(pos, log_prob, 0.0), axis=1, keepdims=True)   # (N, 1)
    cnt = jnp.sum(jnp.where(pos, 1.0, 0.0), axis=1, keepdims=True) + EPS  # (N, 1)
    mean_log_prob = num * pl.reciprocal(cnt, approx=True)                 # (N, 1)

    total = jnp.sum(mean_log_prob, axis=0, keepdims=True)     # (1, 1)
    acc_ref[...] = -total * (1.0 / n)
    # vreg -> sreg via a VMEM element read, then a plain scalar store to the
    # SMEM output (no masked (1,1) vector store / VMEM writeback DMA).
    out_ref[0, 0] = acc_ref[0, 0]


@jax.jit
def supcon_loss(feats, labels):
    """feats: (N, D) float, labels: (N,) int — matches SupConLoss.forward."""
    n, _ = feats.shape
    f = feats.astype(jnp.float32)                    # no explicit lane padding
    lab = labels.astype(jnp.int32).reshape(1, n)     # single label DMA, row oriented
    out = pl.pallas_call(
        supcon_kernel,
        out_shape=jax.ShapeDtypeStruct((1, 1), jnp.float32),
        in_specs=[pl.BlockSpec(memory_space=pltpu.MemorySpace.VMEM),
                  pl.BlockSpec(memory_space=pltpu.MemorySpace.VMEM)],
        out_specs=pl.BlockSpec(memory_space=pltpu.MemorySpace.SMEM),
        scratch_shapes=[pltpu.VMEM((1, 1), jnp.float32)],
    )(f, lab)
    return out[0, 0]


def reference(feats, labels):
    """float64 numpy reference of the PyTorch forward."""
    f = np.asarray(feats, np.float64)
    lab = np.asarray(labels)
    nrm = np.maximum(np.linalg.norm(f, axis=1, keepdims=True), NORM_EPS)
    f = f / nrm
    n = f.shape[0]
    eye = np.eye(n)
    sim = (f @ f.T) / TAU
    mask = (lab[:, None] == lab[None, :]).astype(np.float64)
    sim = sim * (1 - eye)
    expv = np.exp(sim) * (1 - eye)
    log_prob = sim - np.log(expv.sum(1, keepdims=True) + EPS)
    mean_log_prob = (mask * log_prob).sum(1) / (mask.sum(1) + EPS)
    return -mean_log_prob.mean()


if __name__ == "__main__":
    key = jax.random.PRNGKey(0)
    kf, kl = jax.random.split(key)
    feats = jax.random.normal(kf, (BATCH, FEAT_DIM), jnp.float32)
    labels = jax.random.randint(kl, (BATCH,), 0, N_CLASSES, jnp.int32)

    loss = jax.block_until_ready(supcon_loss(feats, labels))
    ref = reference(np.asarray(feats), np.asarray(labels))

    loss_np = float(np.asarray(loss))
    assert np.isfinite(loss_np), loss_np
    assert np.allclose(loss_np, ref, rtol=2e-2, atol=2e-2), (
        f"kernel={loss_np} ref={ref}")
    print("KERNEL_OK")
</pallas_src>

<mosaic_0001>
module attributes {stable_mosaic.version = 11 : i64} {
  func.func @supcon_kernel(%arg0: memref<16x32xf32, #tpu.memory_space<vmem>>, %arg1: memref<1x16xi32, #tpu.memory_space<vmem>>, %arg2: memref<1x1xf32, #tpu.memory_space<smem>>, %arg3: memref<1x1xf32, #tpu.memory_space<vmem>>) attributes {dimension_semantics = [], scalar_prefetch = 0 : i64, scratch_operands = 1 : i64, tpu.core_type = #tpu.core_type<tc>} {
    %c0 = arith.constant 0 : index
    %c0_0 = arith.constant 0 : index
    %0 = vector.load %arg0[%c0, %c0_0] : memref<16x32xf32, #tpu.memory_space<vmem>>, vector<16x32xf32>
    %1 = arith.mulf %0, %0 : vector<16x32xf32>
    %cst = arith.constant dense<0.000000e+00> : vector<16xf32>
    %2 = vector.multi_reduction <add>, %1, %cst [1] : vector<16x32xf32> to vector<16xf32>
    %3 = vector.shape_cast %2 : vector<16xf32> to vector<16x1xf32>
    %cst_1 = arith.constant 1.000000e-24 : f32
    %4 = vector.broadcast %cst_1 : f32 to vector<16x1xf32>
    %5 = arith.maximumf %3, %4 : vector<16x1xf32>
    %6 = math.rsqrt %5 : vector<16x1xf32>
    %7 = vector.broadcast %6 : vector<16x1xf32> to vector<16x32xf32>
    %8 = arith.mulf %0, %7 : vector<16x32xf32>
    %9 = arith.truncf %8 : vector<16x32xf32> to vector<16x32xbf16>
    %cst_2 = arith.constant dense<0.000000e+00> : vector<16x16xf32>
    %10 = tpu.matmul %9, %9, %cst_2 {dimension_numbers = #tpu.dot_dimension_numbers<[1], [1], [0], [0], [0, 0, 1, 0], [], []>} : vector<16x32xbf16>, vector<16x32xbf16>, vector<16x16xf32> -> vector<16x16xf32>
    %cst_3 = arith.constant 14.2857141 : f32
    %11 = vector.broadcast %cst_3 : f32 to vector<16x16xf32>
    %12 = arith.mulf %10, %11 : vector<16x16xf32>
    %13 = tpu.iota {dimensions = array<i32: 0>} : vector<16x16xi32>
    %14 = tpu.iota {dimensions = array<i32: 1>} : vector<16x16xi32>
    %15 = arith.cmpi ne, %13, %14 : vector<16x16xi32>
    %cst_4 = arith.constant 0.000000e+00 : f32
    %16 = vector.broadcast %cst_4 : f32 to vector<16x16xf32>
    %17 = arith.select %15, %12, %16 : vector<16x16xi1>, vector<16x16xf32>
    %18 = math.exp %17 : vector<16x16xf32>
    %cst_5 = arith.constant 0.000000e+00 : f32
    %19 = vector.broadcast %cst_5 : f32 to vector<16x16xf32>
    %20 = arith.select %15, %18, %19 : vector<16x16xi1>, vector<16x16xf32>
    %cst_6 = arith.constant dense<0.000000e+00> : vector<16xf32>
    %21 = vector.multi_reduction <add>, %20, %cst_6 [1] : vector<16x16xf32> to vector<16xf32>
    %22 = vector.shape_cast %21 : vector<16xf32> to vector<16x1xf32>
    %cst_7 = arith.constant 9.99999993E-9 : f32
    %23 = vector.broadcast %cst_7 : f32 to vector<16x1xf32>
    %24 = arith.addf %22, %23 : vector<16x1xf32>
    %25 = math.log %24 : vector<16x1xf32>
    %26 = vector.broadcast %25 : vector<16x1xf32> to vector<16x16xf32>
    %27 = arith.subf %17, %26 : vector<16x16xf32>
    %c0_8 = arith.constant 0 : index
    %c0_9 = arith.constant 0 : index
    %28 = vector.load %arg1[%c0_8, %c0_9] : memref<1x16xi32, #tpu.memory_space<vmem>>, vector<1x16xi32>
    %29 = arith.sitofp %28 : vector<1x16xi32> to vector<1x16xf32>
    %30 = arith.cmpi eq, %13, %14 : vector<16x16xi32>
    %31 = arith.extui %30 : vector<16x16xi1> to vector<16x16xi32>
    %32 = arith.sitofp %31 : vector<16x16xi32> to vector<16x16xf32>
    %cst_10 = arith.constant dense<0.000000e+00> : vector<16x1xf32>
    %33 = tpu.matmul %32, %29, %cst_10 {dimension_numbers = #tpu.dot_dimension_numbers<[1], [1], [0], [0], [0, 0, 1, 0], [], []>} : vector<16x16xf32>, vector<1x16xf32>, vector<16x1xf32> -> vector<16x1xf32>
    %34 = vector.broadcast %33 : vector<16x1xf32> to vector<16x16xf32>
    %35 = vector.broadcast %29 : vector<1x16xf32> to vector<16x16xf32>
    %36 = arith.cmpf oeq, %34, %35 : vector<16x16xf32>
    %cst_11 = arith.constant 0.000000e+00 : f32
    %37 = vector.broadcast %cst_11 : f32 to vector<16x16xf32>
    %38 = arith.select %36, %27, %37 : vector<16x16xi1>, vector<16x16xf32>
    %cst_12 = arith.constant dense<0.000000e+00> : vector<16xf32>
    %39 = vector.multi_reduction <add>, %38, %cst_12 [1] : vector<16x16xf32> to vector<16xf32>
    %40 = vector.shape_cast %39 : vector<16xf32> to vector<16x1xf32>
    %cst_13 = arith.constant 1.000000e+00 : f32
    %cst_14 = arith.constant 0.000000e+00 : f32
    %41 = vector.broadcast %cst_13 : f32 to vector<16x16xf32>
    %42 = vector.broadcast %cst_14 : f32 to vector<16x16xf32>
    %43 = arith.select %36, %41, %42 : vector<16x16xi1>, vector<16x16xf32>
    %cst_15 = arith.constant dense<0.000000e+00> : vector<16xf32>
    %44 = vector.multi_reduction <add>, %43, %cst_15 [1] : vector<16x16xf32> to vector<16xf32>
    %45 = vector.shape_cast %44 : vector<16xf32> to vector<16x1xf32>
    %cst_16 = arith.constant 9.99999993E-9 : f32
    %46 = vector.broadcast %cst_16 : f32 to vector<16x1xf32>
    %47 = arith.addf %45, %46 : vector<16x1xf32>
    %48 = tpu.reciprocal %47 {approx = true} : vector<16x1xf32> -> vector<16x1xf32>
    %49 = arith.mulf %40, %48 : vector<16x1xf32>
    %cst_17 = arith.constant dense<0.000000e+00> : vector<1xf32>
    %50 = vector.multi_reduction <add>, %49, %cst_17 [0] : vector<16x1xf32> to vector<1xf32>
    %51 = vector.shape_cast %50 : vector<1xf32> to vector<1x1xf32>
    %cst_18 = arith.constant 0.000000e+00 : f32
    %52 = vector.broadcast %cst_18 : f32 to vector<1x1xf32>
    %53 = arith.subf %52, %51 : vector<1x1xf32>
    %cst_19 = arith.constant 6.250000e-02 : f32
    %54 = vector.broadcast %cst_19 : f32 to vector<1x1xf32>
    %55 = arith.mulf %53, %54 : vector<1x1xf32>
    %c0_20 = arith.constant 0 : index
    %c0_21 = arith.constant 0 : index
    %56 = vector.load %arg3[%c0_20, %c0_21] : memref<1x1xf32, #tpu.memory_space<vmem>>, vector<1x1xf32>
    tpu.vector_store %arg3[%c0_20, %c0_21], %55 {strides = array<i32>} : memref<1x1xf32, #tpu.memory_space<vmem>>, vector<1x1xf32>,
    %c0_22 = arith.constant 0 : index
    %c0_23 = arith.constant 0 : index
    %57 = vector.load %arg3[%c0_22, %c0_23] : memref<1x1xf32, #tpu.memory_space<vmem>>, vector<1x1xf32>
    %58 = vector.extract %57[0, 0] : f32 from vector<1x1xf32>
    %c0_24 = arith.constant 0 : index
    %c0_25 = arith.constant 0 : index
    %59 = memref.load %arg2[%c0_24, %c0_25] : memref<1x1xf32, #tpu.memory_space<smem>>
    memref.store %58, %arg2[%c0_24, %c0_25] : memref<1x1xf32, #tpu.memory_space<smem>>
    return
  }
}

</mosaic_0001>

<llo_original>
// kernel: supcon_loss.1
$region0: #{supcon_loss.1}
  #allocation0 [shape = 'u32[]', space=smem, size = 0x4, offset = 0x4, fixed_abs, tag = 'smem constant byte address 0x4 - core index']
  #allocation1 [shape = 'u32[144,128]{1,0:T(1,128)}', space=vmem, size = 0x12000, scoped, tag = 'internal scratch']
  #allocation2 [shape = 'f32[1,1]{1,0:T(1,128)}', space=vmem, size = 0x200, scoped, tag = 'scratch operand']
  %s0 = inlined_call_operand.hbm [shape: f32[16,32], index: 0, kind: input, shape index: {}]
  %s1 = inlined_call_operand.vmem [shape: s32[1,16], index: 1, kind: input, shape index: {}]
  %s2 = inlined_call_operand.hbm [shape: f32[1,1], index: 2, kind: output, shape index: {}]
  %s3 = sld [smem:[#allocation0]]
  $region22: #{supcon_loss.1} parent=0
    _
  %s5 = ssub.s32 1, %s3
  %s6 = scalar_select 0, %s5, %s3
  $region1: #{supcon_loss.1} parent=0
    #allocation3 [shape = 'u8[8192]{0}', space=vmem, size = 0x2000, scoped, tag = 'input window, operand 0, single buffered']
    #allocation4 [shape = 's32[1]{0}', space=sflag, size = 0x4, scoped, tag = 'scoped memory for supcon_loss.1']
    #allocation5 [shape = 's32[1]{0}', space=sflag, size = 0x4, scoped, tag = 'scoped memory for supcon_loss.1']
    #allocation6 [shape = 'u8[512]{0}', space=smem, size = 0x200, scoped, tag = 'output window, operand 0, single buffered']
    %7 = vsyncpa [#allocation4], 0
    %8 = vsyncpa [#allocation5], 0
    // Predicated region
    $region2: #{supcon_loss.1} parent=1 // pred_check
      _
    $region3: #{supcon_loss.1} parent=1 // pred_check_branch
      %10 = sbr.rel (0) target = $region5
    $region4: #{supcon_loss.1} parent=1 // pred_region
      %s12 = ssub.s32 256, 256
      %13 = vsyncadd [#allocation4], %s12
      %s14 = sshll.u32 [#allocation3], 4
      %s15 = int_to_ptr.vmem [resolvable:$true] %s14
      %20 = dma.hbm_to_vmem [thread:$0]  %s0, 256, %s15, [#allocation4], 128, 128, 8
    $region5: #{supcon_loss.1} parent=1 // pred_fallthru
      _
    // Predicated region
    $region6: #{supcon_loss.1} parent=1 // pred_check
      _
    $region7: #{supcon_loss.1} parent=1 // pred_check_branch
      %22 = sbr.rel (0) target = $region9
    $region8: #{supcon_loss.1} parent=1 // pred_region
      _
    $region9: #{supcon_loss.1} parent=1 // pred_fallthru
      _
    // Predicated region
    $region10: #{supcon_loss.1} parent=1 // pred_check
      _
    $region11: #{supcon_loss.1} parent=1 // pred_check_branch
      %24 = sbr.rel (0) target = $region13
    $region12: #{supcon_loss.1} parent=1 // pred_region
      %25 = dma.done [#allocation4], 256
    $region13: #{supcon_loss.1} parent=1 // pred_fallthru
      _
    %v27 = vld [vmem:[#allocation3] sm:$0xff]
    %v28 = vld [vmem:[#allocation3 + $0x8] sm:$0xff]
    %v29 = vmul.f32 %v27, %v27
    %v30 = vmul.f32 %v28, %v28
    %vm31 = vcmask 261120
    %v32 = vsel %vm31, %v29, 0.0
    %33 = vadd.xlane.f32.xlu0 %v32
    %v34 = vpop.xlane.xlu0 %33
    %v35 = vsel %vm31, %v30, 0.0
    %36 = vadd.xlane.f32.xlu0 %v35
    %v37 = vpop.xlane.xlu0 %36
    %v38 = vmax.f32 %v34, 1e-24
    %v39 = vmax.f32 %v37, 1e-24
    %v40 = vrsqrt.pop %v38
    %v41 = vrsqrt.pop %v39
    %v42 = vmul.f32 %v27, %v40
    %v43 = vmul.f32 %v28, %v41
    %v44 = vpack.c.bf16 %v43, %v42
    %v46 = vsel %vm31, %v44, 0
    %48 = vmatprep.subr.bf16.mxu0 0
    %49 = vmatpush1.bf16.xpose.msra.mxu0 %v46
    %50 = vmatprep.subr.bf16.mxu0 0
    %51 = vmatpush1.bf16.xpose.msra.mxu0 0
    %52 = vmatprep.subr.bf16.mxu0 0
    %53 = vmatpush1.bf16.xpose.msra.mxu0 0
    %54 = vmatprep.subr.bf16.mxu0 0
    %55 = vmatpush1.bf16.xpose.msra.mxu0 0
    %56 = vmatprep.subr.bf16.mxu0 0
    %57 = vmatpush1.bf16.xpose.msra.mxu0 0
    %58 = vmatprep.subr.bf16.mxu0 0
    %59 = vmatpush1.bf16.xpose.msra.mxu0 0
    %60 = vmatprep.subr.bf16.mxu0 0
    %61 = vmatpush1.bf16.xpose.msra.mxu0 0
    %62 = vmatprep.subr.bf16.mxu0 0
    %63 = vmatpush1.bf16.xpose.msra.mxu0 0
    %64 = vmatprep.subr.bf16.mxu0 0
    %65 = vmatpush1.bf16.xpose.msra.mxu0 0
    %66 = vmatprep.subr.bf16.mxu0 0
    %67 = vmatpush1.bf16.xpose.msra.mxu0 0
    %68 = vmatprep.subr.bf16.mxu0 0
    %69 = vmatpush1.bf16.xpose.msra.mxu0 0
    %70 = vmatprep.subr.bf16.mxu0 0
    %71 = vmatpush1.bf16.xpose.msra.mxu0 0
    %72 = vmatprep.subr.bf16.mxu0 0
    %73 = vmatpush1.bf16.xpose.msra.mxu0 0
    %74 = vmatprep.subr.bf16.mxu0 0
    %75 = vmatpush1.bf16.xpose.msra.mxu0 0
    %76 = vmatprep.subr.bf16.mxu0 0
    %77 = vmatpush1.bf16.xpose.msra.mxu0 0
    %78 = vmatprep.subr.bf16.mxu0 0
    %79 = vmatpush1.bf16.xpose.msra.mxu0 0
    %80 = vmatprep.mubr.bf16.mxu0 0
    %81 = vmatmul.mubr.bf16.gmra.mrb[0].mxu0 %v46
    %v82 = vpop.f32.mrb[0].mxu0
    %v83 = vadd.f32 0.0, %v82
    %v84 = vpop.f32.mrb[0].mxu0
    %v85 = vpop.f32.mrb[0].mxu0
    %v86 = vadd.f32 0.0, %v85
    %v87 = vpop.f32.mrb[0].mxu0
    %88 = vdwg.mxu0
    %v89 = vmul.f32 %v83, 14.285714
    %v90 = vmul.f32 %v86, 14.285714
    %v91 = vlaneseq
    %v92 = vshrl.u32 %v91, 7
    %v93 = vadd.s32 %v92, 8
    %v94 = vlaneseq
    %v95 = vand.u32 %v94, 127
    %vm96 = vcmp.ne.s32.totalorder %v92, %v95
    %vm97 = vcmp.ne.s32.totalorder %v93, %v95
    %v98 = vsel %vm96, %v89, 0.0
    %v99 = vsel %vm97, %v90, 0.0
    %v100 = vmul.f32 %v98, 1.442695
    %v101 = vpow.pop %v100
    %v102 = vmul.f32 %v99, 1.442695
    %v103 = vpow.pop %v102
    %v104 = vsel %vm96, %v101, 0.0
    %v105 = vsel %vm97, %v103, 0.0
    %vm106 = vcmask 130048
    %v107 = vsel %vm106, %v104, 0.0
    %108 = vadd.xlane.f32.xlu0 %v107
    %v109 = vpop.xlane.xlu0 %108
    %v110 = vsel %vm106, %v105, 0.0
    %111 = vadd.xlane.f32.xlu0 %v110
    %v112 = vpop.xlane.xlu0 %111
    %v113 = vadd.f32 %v109, 1e-08
    %v114 = vadd.f32 %v112, 1e-08
    %v115 = vlog2.pop %v113
    %v116 = vmul.f32 %v115, 0.6931472
    %v117 = vlog2.pop %v114
    %v118 = vmul.f32 %v117, 0.6931472
    %v119 = vsub.f32 %v98, %v116
    %v120 = vsub.f32 %v99, %v118
    %v121 = vld [vmem:[%s1] sm:$0x1]
    %v122 = vcvt.s32.f32 %v121
    %vm123 = vcmp.eq.s32.totalorder %v92, %v95
    %vm124 = vcmp.eq.s32.totalorder %v93, %v95
    %v125 = vsel %vm123, 1, 0
    %v126 = vsel %vm124, 1, 0
    %v127 = vcvt.s32.f32 %v125
    %v128 = vcvt.s32.f32 %v126
    %v130 = vlaneseq
    %v131 = vshrl.u32 %v130, 7
    %v132 = vsub.s32 0, %v131
    %v133 = vrot.slane %v122, %v132
    %v135 = vmul.f32 %v127, %v133
    %v136 = vmul.f32 %v128, %v133
    %v137 = vsel %vm106, %v135, 0.0
    %138 = vadd.xlane.f32.xlu0 %v137
    %v139 = vpop.xlane.xlu0 %138
    %v140 = vsel %vm106, %v136, 0.0
    %141 = vadd.xlane.f32.xlu0 %v140
    %v142 = vpop.xlane.xlu0 %141
    %vm143 = vcmp.eq.f32.partialorder %v139, %v133
    %vm144 = vcmp.eq.f32.partialorder %v142, %v133
    %v145 = vsel %vm143, %v119, 0.0
    %v146 = vsel %vm144, %v120, 0.0
    %v147 = vsel %vm106, %v145, 0.0
    %148 = vadd.xlane.f32.xlu0 %v147
    %v149 = vpop.xlane.xlu0 %148
    %v150 = vsel %vm106, %v146, 0.0
    %151 = vadd.xlane.f32.xlu0 %v150
    %v152 = vpop.xlane.xlu0 %151
    %v153 = vsel %vm143, 1.0, 0.0
    %v154 = vsel %vm144, 1.0, 0.0
    %v155 = vsel %vm106, %v153, 0.0
    %156 = vadd.xlane.f32.xlu0 %v155
    %v157 = vpop.xlane.xlu0 %156
    %v158 = vsel %vm106, %v154, 0.0
    %159 = vadd.xlane.f32.xlu0 %v158
    %v160 = vpop.xlane.xlu0 %159
    %v161 = vadd.f32 %v157, 1e-08
    %v162 = vadd.f32 %v160, 1e-08
    %v163 = vrcp.pop %v161
    %v164 = vrcp.pop %v162
    %v165 = vmul.f32 %v149, %v163
    %v166 = vmul.f32 %v152, %v164
    %v167 = vadd.f32 %v165, %v166
    %v168 = vrot.slane %v167, 4
    %v169 = vadd.f32 %v167, %v168
    %v170 = vrot.slane %v169, 2
    %v171 = vadd.f32 %v169, %v170
    %v172 = vrot.slane %v171, 1
    %v173 = vadd.f32 %v171, %v172
    %v174 = vsub.f32 0.0, %v173
    %v175 = vmul.f32 %v174, 0.0625
    %vm176 = vcmask 0
    %177 = vst.msk [vmem:[#allocation2] sm:$0x1] %vm176, %v175
    %v178 = vld [vmem:[#allocation2] sm:$0x1]
    %s179 = vtos %v178
    %s180 = scalar_lea.smem [#allocation6], 0
    %181 = sst [smem:[%s180]] %s179
    // Predicated region
    $region14: #{supcon_loss.1} parent=1 // pred_check
      _
    $region15: #{supcon_loss.1} parent=1 // pred_check_branch
      %183 = sbr.rel (0) target = $region17
    $region16: #{supcon_loss.1} parent=1 // pred_region
      %s185 = ssub.s32 16, 16
      %186 = vsyncadd [#allocation5], %s185
      %189 = dma.smem_to_hbm [#allocation6], 16, %s2, [#allocation5]
    $region17: #{supcon_loss.1} parent=1 // pred_fallthru
      _
    // Predicated region
    $region18: #{supcon_loss.1} parent=1 // pred_check
      _
    $region19: #{supcon_loss.1} parent=1 // pred_check_branch
      %191 = sbr.rel (0) target = $region21
    $region20: #{supcon_loss.1} parent=1 // pred_region
      %192 = dma.done [#allocation5], 16
    $region21: #{supcon_loss.1} parent=1 // pred_fallthru
      _
    %193 = sfence
    %194 = vsyncpa [#allocation4], 1
    %195 = vsyncpa [#allocation5], 1

</llo_original>
